<compile_context>
chip_gen: v5e
topology: v5e:2x2
jax: 0.10.0
libtpu: 0.0.40
codegen_flags: <defaults>
</compile_context>

<pallas_src>
import functools

import jax
import jax.numpy as jnp
from jax.experimental import pallas as pl
from jax.experimental.pallas import tpu as pltpu

LN_EPS = 1e-5  # nn.LayerNorm default


def _ff_kernel(x_ref, g_ref, beta_ref, w1_ref, b1_ref, w2_ref, b2_ref,
               o_ref, xn_ref, acc_ref):
    """One (row_tile, F_tile) grid step: LN (once) + Linear1-chunk + SiLU + accumulate Linear2-chunk."""
    j = pl.program_id(1)

    # First F-chunk for this row tile: compute LayerNorm once, zero the accumulator.
    @pl.when(j == 0)
    def _():
        x = x_ref[...].astype(jnp.float32)                      # (TM, D)
        mu = jnp.mean(x, axis=-1, keepdims=True)
        xc = x - mu
        var = jnp.mean(xc * xc, axis=-1, keepdims=True)          # biased, like PyTorch
        xn = xc * jax.lax.rsqrt(var + LN_EPS)
        xn = xn * g_ref[...].astype(jnp.float32) + beta_ref[...].astype(jnp.float32)
        xn_ref[...] = xn.astype(xn_ref.dtype)                    # cached in matmul dtype
        acc_ref[...] = jnp.zeros_like(acc_ref)

    # Linear 1 chunk + SiLU (f32 elementwise math; MXU operands in matmul dtype).
    xn = xn_ref[...]                                              # (TM, D)
    h = jnp.dot(xn, w1_ref[...], preferred_element_type=jnp.float32)
    h = h + b1_ref[...].astype(jnp.float32)                       # (TM, TF)
    h = h * jax.nn.sigmoid(h)                                     # SiLU(x) = x * sigmoid(x)

    # Linear 2 chunk, accumulated in f32.
    acc_ref[...] += jnp.dot(h.astype(w2_ref.dtype), w2_ref[...],
                            preferred_element_type=jnp.float32)

    # Last F-chunk: add bias and write the output tile (lane-dense full D).
    @pl.when(j == pl.num_programs(1) - 1)
    def _():
        o_ref[...] = (acc_ref[...] + b2_ref[...].astype(jnp.float32)).astype(o_ref.dtype)


def _round_up(x, m):
    return (x + m - 1) // m * m


def _divisor_f_tile(F, cap):
    """Largest multiple of 128 <= cap that divides F exactly; else the full F."""
    if F <= cap or F % 128 != 0 or cap < 128:
        return F
    cand = (min(cap, F) // 128) * 128
    while cand >= 128:
        if F % cand == 0:
            return cand
        cand -= 128
    return F


def _next_smaller_f_tile(F, tf):
    """Next smaller 128-multiple divisor of F below tf (or tf if none)."""
    cand = tf - 128
    while cand >= 128:
        if F % cand == 0:
            return cand
        cand -= 128
    return tf


def _select_tiles(rows, D, F, x_it, out_it, mm_it, row_tile, f_tile, budget):
    """Pick (tm, tf) so the double-buffered VMEM footprint stays under budget."""
    tm = min(row_tile, _round_up(rows, 8))
    tm = _round_up(tm, 8)

    def footprint(tm_, tf_):
        # x in + out double-buffered, xn + acc scratch, W1 + W2 chunks double-buffered, biases.
        row_part = tm_ * D * (2 * x_it + 2 * out_it + mm_it + 4)
        w_part = 4 * tf_ * D * mm_it
        bias_part = 2 * (3 * D + tf_) * 4
        return row_part + w_part + bias_part

    tf = _divisor_f_tile(F, f_tile)
    # Shrink the F tile first (weights dominate), then the row tile.
    while footprint(tm, tf) > budget and tf > 128 and tf % 128 == 0:
        nxt = _next_smaller_f_tile(F, tf)
        if nxt == tf:
            break
        tf = nxt
    while footprint(tm, tf) > budget and tm > 8:
        tm = max(8, _round_up(tm // 2, 8))
    return tm, tf, footprint(tm, tf)


@functools.partial(jax.jit, static_argnames=("row_tile", "f_tile", "matmul_dtype"))
def feed_forward_pallas(x, gamma, beta, w1, b1, w2, b2, *,
                        row_tile=512, f_tile=2048, matmul_dtype=jnp.bfloat16):
    """x: (B, S, D).  w1: (D, F), w2: (F, D). Returns (B, S, D)."""
    B, S, D = x.shape
    F = w1.shape[1]
    rows = B * S

    x_it = x.dtype.itemsize
    mm_it = jnp.dtype(matmul_dtype).itemsize
    tm, tf, footprint = _select_tiles(
        rows, D, F, x_it, x_it, mm_it, row_tile, f_tile, budget=40 * 1024 * 1024)
    rows_p = _round_up(rows, tm)

    x2d = x.reshape(rows, D)
    if rows_p != rows:
        # Zero-padding is LN-safe (eps keeps rsqrt finite) and padded rows are sliced off below.
        x2d = jnp.pad(x2d, ((0, rows_p - rows), (0, 0)))

    g2d = gamma.reshape(1, D).astype(jnp.float32)
    be2d = beta.reshape(1, D).astype(jnp.float32)
    b1_2d = b1.reshape(1, F).astype(jnp.float32)
    b2_2d = b2.reshape(1, D).astype(jnp.float32)
    w1_m = w1.astype(matmul_dtype)
    w2_m = w2.astype(matmul_dtype)

    grid = (rows_p // tm, F // tf)
    w_bytes = (w1_m.size + w2_m.size) * mm_it
    cost = pl.CostEstimate(
        flops=4 * rows_p * D * F,                 # two matmuls (2*M*K*N each)
        transcendentals=rows_p * F,               # sigmoid
        bytes_accessed=(x2d.size * x2d.dtype.itemsize
                        + rows_p * D * x.dtype.itemsize
                        # weights re-streamed per row tile only when F is split.
                        + w_bytes * (grid[0] if grid[1] > 1 else 1)),
    )
    vmem_limit = int(min(max(footprint * 5 // 4 + (4 << 20), 32 << 20), 48 << 20))

    out2d = pl.pallas_call(
        _ff_kernel,
        out_shape=jax.ShapeDtypeStruct((rows_p, D), x.dtype),
        grid_spec=pltpu.PrefetchScalarGridSpec(
            num_scalar_prefetch=0,
            grid=grid,
            in_specs=[
                pl.BlockSpec((tm, D), lambda i, j: (i, 0)),   # x row tile
                pl.BlockSpec((1, D), lambda i, j: (0, 0)),    # gamma
                pl.BlockSpec((1, D), lambda i, j: (0, 0)),    # beta
                pl.BlockSpec((D, tf), lambda i, j: (0, j)),   # W1 F-chunk (D, TF)
                pl.BlockSpec((1, tf), lambda i, j: (0, j)),   # b1 F-chunk
                pl.BlockSpec((tf, D), lambda i, j: (j, 0)),   # W2 F-chunk (TF, D)
                pl.BlockSpec((1, D), lambda i, j: (0, 0)),    # b2
            ],
            out_specs=pl.BlockSpec((tm, D), lambda i, j: (i, 0)),
            scratch_shapes=[
                pltpu.VMEM((tm, D), matmul_dtype),   # cached normalized activations
                pltpu.VMEM((tm, D), jnp.float32),    # f32 output accumulator
            ],
        ),
        compiler_params=pltpu.CompilerParams(
            dimension_semantics=("parallel", "arbitrary"),
            vmem_limit_bytes=vmem_limit,
        ),
        cost_estimate=cost,
    )(x2d, g2d, be2d, w1_m, b1_2d, w2_m, b2_2d)

    if rows_p != rows:
        out2d = out2d[:rows]
    return out2d.reshape(B, S, D)


def init_feed_forward_params(key, model_dim, ff_dim, zero_init=True, dtype=jnp.float32):
    """Deterministic init matching FeedForward.initialize()."""
    k1, k2 = jax.random.split(key)
    # LayerNorm: gamma=1, beta=0.
    gamma = jnp.ones((model_dim,), dtype)
    beta = jnp.zeros((model_dim,), dtype)
    # linear_1: kaiming_normal_ (fan_in = model_dim, gain = sqrt(2)); stored as (in, out).
    std1 = (2.0 / model_dim) ** 0.5
    w1 = (jax.random.normal(k1, (model_dim, ff_dim)) * std1).astype(dtype)
    b1 = jnp.zeros((ff_dim,), dtype)
    # linear_2: zeros if zero_init else xavier_normal_; stored as (in, out) = (ff_dim, model_dim).
    if zero_init:
        w2 = jnp.zeros((ff_dim, model_dim), dtype)
    else:
        std2 = (2.0 / (ff_dim + model_dim)) ** 0.5
        w2 = (jax.random.normal(k2, (ff_dim, model_dim)) * std2).astype(dtype)
    b2 = jnp.zeros((model_dim,), dtype)
    return gamma, beta, w1, b1, w2, b2


def feed_forward_ref(x, gamma, beta, w1, b1, w2, b2):
    """Pure-JAX reference of the PyTorch forward."""
    mu = jnp.mean(x, axis=-1, keepdims=True)
    var = jnp.mean((x - mu) ** 2, axis=-1, keepdims=True)
    xn = (x - mu) / jnp.sqrt(var + LN_EPS) * gamma + beta
    h = xn @ w1 + b1
    h = h * jax.nn.sigmoid(h)
    return h @ w2 + b2


if __name__ == "__main__":
    key = jax.random.PRNGKey(0)
    k_x1, k_x2, k_p1, k_p2 = jax.random.split(key, 4)

    ok = True

    # Config 1: tiny shapes (single grid step, weights fully resident).
    batch, seq, model_dim, ff_dim = 2, 8, 32, 64
    x = jax.random.normal(k_x1, (batch, seq, model_dim), dtype=jnp.float32)
    for zero_init in (True, False):
        params = init_feed_forward_params(k_p1, model_dim, ff_dim, zero_init=zero_init)
        y_ref = feed_forward_ref(x, *params)
        y32 = jax.block_until_ready(
            feed_forward_pallas(x, *params, matmul_dtype=jnp.float32))
        ok &= bool(jnp.allclose(y32, y_ref, atol=1e-5, rtol=1e-5))
        ybf = jax.block_until_ready(feed_forward_pallas(x, *params))
        ok &= bool(jnp.allclose(ybf, y_ref, atol=5e-2, rtol=5e-2))

    # Config 2: exercises row padding + multi-step F accumulation (forced small tiles).
    batch, seq, model_dim, ff_dim = 2, 10, 128, 256
    x = jax.random.normal(k_x2, (batch, seq, model_dim), dtype=jnp.float32)
    params = init_feed_forward_params(k_p2, model_dim, ff_dim, zero_init=False)
    y_ref = feed_forward_ref(x, *params)
    y32 = jax.block_until_ready(
        feed_forward_pallas(x, *params, row_tile=16, f_tile=128,
                            matmul_dtype=jnp.float32))
    ok &= bool(jnp.allclose(y32, y_ref, atol=1e-4, rtol=1e-4))
    ybf = jax.block_until_ready(
        feed_forward_pallas(x, *params, row_tile=16, f_tile=128))
    ok &= bool(jnp.allclose(ybf, y_ref, atol=8e-2, rtol=8e-2))

    if ok:
        print("KERNEL_OK")
    else:
        print("KERNEL_MISMATCH")
</pallas_src>

<mosaic_0001>
module attributes {stable_mosaic.version = 11 : i64} {
  func.func @_ff_kernel(%arg0: i32, %arg1: i32, %arg2: memref<16x32xf32, #tpu.memory_space<vmem>>, %arg3: memref<1x32xf32, #tpu.memory_space<vmem>>, %arg4: memref<1x32xf32, #tpu.memory_space<vmem>>, %arg5: memref<32x64xf32, #tpu.memory_space<vmem>>, %arg6: memref<1x64xf32, #tpu.memory_space<vmem>>, %arg7: memref<64x32xf32, #tpu.memory_space<vmem>>, %arg8: memref<1x32xf32, #tpu.memory_space<vmem>>, %arg9: memref<16x32xf32, #tpu.memory_space<vmem>>, %arg10: memref<16x32xf32, #tpu.memory_space<vmem>>, %arg11: memref<16x32xf32, #tpu.memory_space<vmem>>) attributes {dimension_semantics = [#tpu.dimension_semantics<parallel>, #tpu.dimension_semantics<arbitrary>], iteration_bounds = array<i64: 1, 1>, scalar_prefetch = 0 : i64, scratch_operands = 2 : i64, tpu.core_type = #tpu.core_type<tc>, window_params = [{transform_indices = @transform_0, window_bounds = array<i64: 16, 32>}, {pipeline_mode = #tpu.pipeline_mode<synchronous>, transform_indices = @transform_1, window_bounds = array<i64: 1, 32>}, {pipeline_mode = #tpu.pipeline_mode<synchronous>, transform_indices = @transform_2, window_bounds = array<i64: 1, 32>}, {transform_indices = @transform_3, window_bounds = array<i64: 32, 64>}, {transform_indices = @transform_4, window_bounds = array<i64: 1, 64>}, {transform_indices = @transform_5, window_bounds = array<i64: 64, 32>}, {pipeline_mode = #tpu.pipeline_mode<synchronous>, transform_indices = @transform_6, window_bounds = array<i64: 1, 32>}, {transform_indices = @transform_7, window_bounds = array<i64: 16, 32>}]} {
    %c0_i32 = arith.constant 0 : i32
    %0 = arith.cmpi eq, %arg1, %c0_i32 : i32
    %1 = arith.extui %0 : i1 to i32
    %c0_i32_0 = arith.constant 0 : i32
    %2 = arith.cmpi ne, %1, %c0_i32_0 : i32
    scf.if %2 {
      %c0_16 = arith.constant 0 : index
      %c0_17 = arith.constant 0 : index
      %23 = vector.load %arg2[%c0_16, %c0_17] : memref<16x32xf32, #tpu.memory_space<vmem>>, vector<16x32xf32>
      %cst_18 = arith.constant dense<0.000000e+00> : vector<16xf32>
      %24 = vector.multi_reduction <add>, %23, %cst_18 [1] : vector<16x32xf32> to vector<16xf32>
      %25 = vector.shape_cast %24 : vector<16xf32> to vector<16x1xf32>
      %cst_19 = arith.constant 3.200000e+01 : f32
      %26 = vector.broadcast %cst_19 : f32 to vector<16x1xf32>
      %27 = arith.divf %25, %26 : vector<16x1xf32>
      %28 = vector.broadcast %27 : vector<16x1xf32> to vector<16x32xf32>
      %29 = arith.subf %23, %28 : vector<16x32xf32>
      %30 = arith.mulf %29, %29 : vector<16x32xf32>
      %cst_20 = arith.constant dense<0.000000e+00> : vector<16xf32>
      %31 = vector.multi_reduction <add>, %30, %cst_20 [1] : vector<16x32xf32> to vector<16xf32>
      %32 = vector.shape_cast %31 : vector<16xf32> to vector<16x1xf32>
      %cst_21 = arith.constant 3.200000e+01 : f32
      %33 = vector.broadcast %cst_21 : f32 to vector<16x1xf32>
      %34 = arith.divf %32, %33 : vector<16x1xf32>
      %cst_22 = arith.constant 9.99999974E-6 : f32
      %35 = vector.broadcast %cst_22 : f32 to vector<16x1xf32>
      %36 = arith.addf %34, %35 : vector<16x1xf32>
      %37 = math.rsqrt %36 : vector<16x1xf32>
      %38 = vector.broadcast %37 : vector<16x1xf32> to vector<16x32xf32>
      %39 = arith.mulf %29, %38 : vector<16x32xf32>
      %c0_23 = arith.constant 0 : index
      %c0_24 = arith.constant 0 : index
      %40 = vector.load %arg3[%c0_23, %c0_24] : memref<1x32xf32, #tpu.memory_space<vmem>>, vector<1x32xf32>
      %41 = vector.broadcast %40 : vector<1x32xf32> to vector<16x32xf32>
      %42 = arith.mulf %39, %41 : vector<16x32xf32>
      %c0_25 = arith.constant 0 : index
      %c0_26 = arith.constant 0 : index
      %43 = vector.load %arg4[%c0_25, %c0_26] : memref<1x32xf32, #tpu.memory_space<vmem>>, vector<1x32xf32>
      %44 = vector.broadcast %43 : vector<1x32xf32> to vector<16x32xf32>
      %45 = arith.addf %42, %44 : vector<16x32xf32>
      %c0_27 = arith.constant 0 : index
      %c0_28 = arith.constant 0 : index
      %46 = vector.load %arg10[%c0_27, %c0_28] : memref<16x32xf32, #tpu.memory_space<vmem>>, vector<16x32xf32>
      tpu.vector_store %arg10[%c0_27, %c0_28], %45 {strides = array<i32>} : memref<16x32xf32, #tpu.memory_space<vmem>>, vector<16x32xf32>,
      %cst_29 = arith.constant 0.000000e+00 : f32
      %47 = vector.broadcast %cst_29 : f32 to vector<16x32xf32>
      %c0_30 = arith.constant 0 : index
      %c0_31 = arith.constant 0 : index
      %48 = vector.load %arg11[%c0_30, %c0_31] : memref<16x32xf32, #tpu.memory_space<vmem>>, vector<16x32xf32>
      tpu.vector_store %arg11[%c0_30, %c0_31], %47 {strides = array<i32>} : memref<16x32xf32, #tpu.memory_space<vmem>>, vector<16x32xf32>,
    } else {
    }
    %c0 = arith.constant 0 : index
    %c0_1 = arith.constant 0 : index
    %3 = vector.load %arg10[%c0, %c0_1] : memref<16x32xf32, #tpu.memory_space<vmem>>, vector<16x32xf32>
    %c0_2 = arith.constant 0 : index
    %c0_3 = arith.constant 0 : index
    %4 = vector.load %arg5[%c0_2, %c0_3] : memref<32x64xf32, #tpu.memory_space<vmem>>, vector<32x64xf32>
    %cst = arith.constant dense<0.000000e+00> : vector<16x64xf32>
    %5 = tpu.matmul %3, %4, %cst {dimension_numbers = #tpu.dot_dimension_numbers<[1], [0], [0], [1], [0, 0, 1, 1], [], []>} : vector<16x32xf32>, vector<32x64xf32>, vector<16x64xf32> -> vector<16x64xf32>
    %c0_4 = arith.constant 0 : index
    %c0_5 = arith.constant 0 : index
    %6 = vector.load %arg6[%c0_4, %c0_5] : memref<1x64xf32, #tpu.memory_space<vmem>>, vector<1x64xf32>
    %7 = vector.broadcast %6 : vector<1x64xf32> to vector<16x64xf32>
    %8 = arith.addf %5, %7 : vector<16x64xf32>
    %9 = arith.negf %8 : vector<16x64xf32>
    %10 = math.exp %9 : vector<16x64xf32>
    %cst_6 = arith.constant 1.000000e+00 : f32
    %11 = vector.broadcast %cst_6 : f32 to vector<16x64xf32>
    %12 = arith.addf %11, %10 : vector<16x64xf32>
    %13 = arith.divf %11, %12 : vector<16x64xf32>
    %14 = arith.mulf %8, %13 : vector<16x64xf32>
    %c0_7 = arith.constant 0 : index
    %c0_8 = arith.constant 0 : index
    %15 = vector.load %arg11[%c0_7, %c0_8] : memref<16x32xf32, #tpu.memory_space<vmem>>, vector<16x32xf32>
    %c0_9 = arith.constant 0 : index
    %c0_10 = arith.constant 0 : index
    %16 = vector.load %arg7[%c0_9, %c0_10] : memref<64x32xf32, #tpu.memory_space<vmem>>, vector<64x32xf32>
    %cst_11 = arith.constant dense<0.000000e+00> : vector<16x32xf32>
    %17 = tpu.matmul %14, %16, %cst_11 {dimension_numbers = #tpu.dot_dimension_numbers<[1], [0], [0], [1], [0, 0, 1, 1], [], []>} : vector<16x64xf32>, vector<64x32xf32>, vector<16x32xf32> -> vector<16x32xf32>
    %18 = arith.addf %15, %17 : vector<16x32xf32>
    %c0_12 = arith.constant 0 : index
    %c0_13 = arith.constant 0 : index
    %19 = vector.load %arg11[%c0_12, %c0_13] : memref<16x32xf32, #tpu.memory_space<vmem>>, vector<16x32xf32>
    tpu.vector_store %arg11[%c0_12, %c0_13], %18 {strides = array<i32>} : memref<16x32xf32, #tpu.memory_space<vmem>>, vector<16x32xf32>,
    %c0_i32_14 = arith.constant 0 : i32
    %20 = arith.cmpi eq, %arg1, %c0_i32_14 : i32
    %21 = arith.extui %20 : i1 to i32
    %c0_i32_15 = arith.constant 0 : i32
    %22 = arith.cmpi ne, %21, %c0_i32_15 : i32
    scf.if %22 {
      %c0_16 = arith.constant 0 : index
      %c0_17 = arith.constant 0 : index
      %23 = vector.load %arg11[%c0_16, %c0_17] : memref<16x32xf32, #tpu.memory_space<vmem>>, vector<16x32xf32>
      %c0_18 = arith.constant 0 : index
      %c0_19 = arith.constant 0 : index
      %24 = vector.load %arg8[%c0_18, %c0_19] : memref<1x32xf32, #tpu.memory_space<vmem>>, vector<1x32xf32>
      %25 = vector.broadcast %24 : vector<1x32xf32> to vector<16x32xf32>
      %26 = arith.addf %23, %25 : vector<16x32xf32>
      %c0_20 = arith.constant 0 : index
      %c0_21 = arith.constant 0 : index
      %27 = vector.load %arg9[%c0_20, %c0_21] : memref<16x32xf32, #tpu.memory_space<vmem>>, vector<16x32xf32>
      tpu.vector_store %arg9[%c0_20, %c0_21], %26 {strides = array<i32>} : memref<16x32xf32, #tpu.memory_space<vmem>>, vector<16x32xf32>,
    } else {
    }
    return
  }
  func.func @transform_0(%arg0: i32, %arg1: i32) -> (i32, i32) {
    %c0_i32 = arith.constant 0 : i32
    %c0_i32_0 = arith.constant 0 : i32
    return %arg0, %c0_i32 : i32, i32
  }
  func.func @transform_1(%arg0: i32, %arg1: i32) -> (i32, i32) {
    %c0_i32 = arith.constant 0 : i32
    %c0_i32_0 = arith.constant 0 : i32
    %c0_i32_1 = arith.constant 0 : i32
    return %c0_i32, %c0_i32_0 : i32, i32
  }
  func.func @transform_2(%arg0: i32, %arg1: i32) -> (i32, i32) {
    %c0_i32 = arith.constant 0 : i32
    %c0_i32_0 = arith.constant 0 : i32
    %c0_i32_1 = arith.constant 0 : i32
    return %c0_i32, %c0_i32_0 : i32, i32
  }
  func.func @transform_3(%arg0: i32, %arg1: i32) -> (i32, i32) {
    %c0_i32 = arith.constant 0 : i32
    %c0_i32_0 = arith.constant 0 : i32
    return %c0_i32, %arg1 : i32, i32
  }
  func.func @transform_4(%arg0: i32, %arg1: i32) -> (i32, i32) {
    %c0_i32 = arith.constant 0 : i32
    %c0_i32_0 = arith.constant 0 : i32
    return %c0_i32, %arg1 : i32, i32
  }
  func.func @transform_5(%arg0: i32, %arg1: i32) -> (i32, i32) {
    %c0_i32 = arith.constant 0 : i32
    %c0_i32_0 = arith.constant 0 : i32
    return %arg1, %c0_i32 : i32, i32
  }
  func.func @transform_6(%arg0: i32, %arg1: i32) -> (i32, i32) {
    %c0_i32 = arith.constant 0 : i32
    %c0_i32_0 = arith.constant 0 : i32
    %c0_i32_1 = arith.constant 0 : i32
    return %c0_i32, %c0_i32_0 : i32, i32
  }
  func.func @transform_7(%arg0: i32, %arg1: i32) -> (i32, i32) {
    %c0_i32 = arith.constant 0 : i32
    %c0_i32_0 = arith.constant 0 : i32
    return %arg0, %c0_i32 : i32, i32
  }
}

</mosaic_0001>

<llo_original>
// kernel: feed_forward_pallas.1
$region0: #{feed_forward_pallas.1}
  #allocation0 [shape = 'u32[]', space=smem, size = 0x4, offset = 0x4, fixed_abs, tag = 'smem constant byte address 0x4 - core index']
  #allocation1 [shape = 'u32[72,128]{1,0:T(1,128)}', space=vmem, size = 0x9000, scoped, tag = 'internal scratch']
  #allocation2 [shape = 'f32[16,32]{1,0:T(8,128)}', space=vmem, size = 0x2000, scoped, tag = 'scratch operand']
  #allocation3 [shape = 'f32[16,32]{1,0:T(8,128)}', space=vmem, size = 0x2000, scoped, tag = 'scratch operand']
  %s0 = inlined_call_operand.vmem [shape: f32[16,32], index: 0, kind: input, shape index: {}]
  %s1 = inlined_call_operand.vmem [shape: f32[1,32], index: 1, kind: input, shape index: {}]
  %s2 = inlined_call_operand.vmem [shape: f32[1,32], index: 2, kind: input, shape index: {}]
  %s3 = inlined_call_operand.vmem [shape: f32[32,64], index: 3, kind: input, shape index: {}]
  %s4 = inlined_call_operand.vmem [shape: f32[1,64], index: 4, kind: input, shape index: {}]
  %s5 = inlined_call_operand.vmem [shape: f32[64,32], index: 5, kind: input, shape index: {}]
  %s6 = inlined_call_operand.vmem [shape: f32[1,32], index: 6, kind: input, shape index: {}]
  %s7 = inlined_call_operand.hbm [shape: f32[16,32], index: 7, kind: output, shape index: {}]
  %s8 = sld [smem:[#allocation0]]
  $region46: #{feed_forward_pallas.1} parent=0
    _
  %s10 = ssub.s32 1, %s8
  %s11 = scalar_select 0, %s10, %s8
  $region1: #{feed_forward_pallas.1} parent=0
    #allocation4 [shape = 'u8[8192]{0}', space=vmem, size = 0x2000, scoped, tag = 'output window, operand 0, single buffered']
    #allocation5 [shape = 's32[1]{0}', space=sflag, size = 0x4, scoped, tag = 'scoped memory for feed_forward_pallas.1']
    %12 = vsyncpa [#allocation5], 0
    // Predicated region
    $region2: #{feed_forward_pallas.1} parent=1 // pred_check
      _
    $region3: #{feed_forward_pallas.1} parent=1 // pred_check_branch
      %14 = sbr.rel (0) target = $region5
    $region4: #{feed_forward_pallas.1} parent=1 // pred_region
      _
    $region5: #{feed_forward_pallas.1} parent=1 // pred_fallthru
      _
    // Predicated region
    $region6: #{feed_forward_pallas.1} parent=1 // pred_check
      _
    $region7: #{feed_forward_pallas.1} parent=1 // pred_check_branch
      %16 = sbr.rel (0) target = $region9
    $region8: #{feed_forward_pallas.1} parent=1 // pred_region
      _
    $region9: #{feed_forward_pallas.1} parent=1 // pred_fallthru
      _
    // Predicated region
    $region10: #{feed_forward_pallas.1} parent=1 // pred_check
      _
    $region11: #{feed_forward_pallas.1} parent=1 // pred_check_branch
      %18 = sbr.rel (0) target = $region13
    $region12: #{feed_forward_pallas.1} parent=1 // pred_region
      _
    $region13: #{feed_forward_pallas.1} parent=1 // pred_fallthru
      _
    // Predicated region
    $region14: #{feed_forward_pallas.1} parent=1 // pred_check
      _
    $region15: #{feed_forward_pallas.1} parent=1 // pred_check_branch
      %20 = sbr.rel (0) target = $region17
    $region16: #{feed_forward_pallas.1} parent=1 // pred_region
      _
    $region17: #{feed_forward_pallas.1} parent=1 // pred_fallthru
      _
    // Predicated region
    $region18: #{feed_forward_pallas.1} parent=1 // pred_check
      _
    $region19: #{feed_forward_pallas.1} parent=1 // pred_check_branch
      %22 = sbr.rel (0) target = $region21
    $region20: #{feed_forward_pallas.1} parent=1 // pred_region
      _
    $region21: #{feed_forward_pallas.1} parent=1 // pred_fallthru
      _
    // Predicated region
    $region22: #{feed_forward_pallas.1} parent=1 // pred_check
      _
    $region23: #{feed_forward_pallas.1} parent=1 // pred_check_branch
      %24 = sbr.rel (0) target = $region25
    $region24: #{feed_forward_pallas.1} parent=1 // pred_region
      _
    $region25: #{feed_forward_pallas.1} parent=1 // pred_fallthru
      _
    // Predicated region
    $region26: #{feed_forward_pallas.1} parent=1 // pred_check
      _
    $region27: #{feed_forward_pallas.1} parent=1 // pred_check_branch
      %26 = sbr.rel (0) target = $region29
    $region28: #{feed_forward_pallas.1} parent=1 // pred_region
      _
    $region29: #{feed_forward_pallas.1} parent=1 // pred_fallthru
      _
    %p27 = scmp.eq.s32.totalorder 0, 0
    // Predicated region
    $region30: #{feed_forward_pallas.1} parent=1 // pred_check
      %p28 = pneg %p27
    $region31: #{feed_forward_pallas.1} parent=1 // pred_check_branch
      %30 = sbr.rel (%p28) target = $region33
    $region32: #{feed_forward_pallas.1} parent=1 // pred_region
      %v31 = vld [vmem:[%s0] sm:$0xff]
      %v32 = vld [vmem:[%s0 + $0x8] sm:$0xff]
      %vm33 = vcmask 261120
      %v34 = vsel %vm33, %v31, 0.0
      %35 = vadd.xlane.f32.xlu0 %v34
      %v36 = vpop.xlane.xlu0 %35
      %v37 = vsel %vm33, %v32, 0.0
      %38 = vadd.xlane.f32.xlu0 %v37
      %v39 = vpop.xlane.xlu0 %38
      %v40 = vrcp.pop 32.0
      %v41 = vmul.f32 32.0, %v40
      %v42 = vsub.f32 1.0, %v41
      %v43 = vmul.f32 %v40, %v42
      %v44 = vadd.f32 %v40, %v43
      %vm45 = vweird.f32 %v40
      %v46 = vsel %vm45, %v40, %v44
      %v47 = vmul.f32 %v36, %v46
      %v48 = vmul.f32 %v39, %v46
      %v49 = vsub.f32 %v31, %v47
      %v50 = vsub.f32 %v32, %v48
      %v51 = vmul.f32 %v49, %v49
      %v52 = vmul.f32 %v50, %v50
      %v53 = vsel %vm33, %v51, 0.0
      %54 = vadd.xlane.f32.xlu0 %v53
      %v55 = vpop.xlane.xlu0 %54
      %v56 = vsel %vm33, %v52, 0.0
      %57 = vadd.xlane.f32.xlu0 %v56
      %v58 = vpop.xlane.xlu0 %57
      %v59 = vmul.f32 %v55, %v46
      %v60 = vmul.f32 %v58, %v46
      %v61 = vadd.f32 %v59, 1e-05
      %v62 = vadd.f32 %v60, 1e-05
      %v63 = vrsqrt.pop %v61
      %v64 = vmul.f32 %v63, %v61
      %v65 = vmul.f32 %v64, %v63
      %v66 = vmul.f32 0.5, %v65
      %v67 = vsub.f32 1.5, %v66
      %v68 = vmul.f32 %v63, %v67
      %vm69 = vweird.f32 %v61
      %vm70 = vweird.f32 %v63
      %vm71 = vmor %vm69, %vm70
      %v72 = vsel %vm71, %v63, %v68
      %v73 = vrsqrt.pop %v62
      %v74 = vmul.f32 %v73, %v62
      %v75 = vmul.f32 %v74, %v73
      %v76 = vmul.f32 0.5, %v75
      %v77 = vsub.f32 1.5, %v76
      %v78 = vmul.f32 %v73, %v77
      %vm79 = vweird.f32 %v62
      %vm80 = vweird.f32 %v73
      %vm81 = vmor %vm79, %vm80
      %v82 = vsel %vm81, %v73, %v78
      %v83 = vmul.f32 %v49, %v72
      %v84 = vmul.f32 %v50, %v82
      %v85 = vld [vmem:[%s1] sm:$0x1]
      %v87 = vperm.slane %v85, 0
      %v89 = vmul.f32 %v83, %v87
      %v90 = vmul.f32 %v84, %v87
      %v91 = vld [vmem:[%s2] sm:$0x1]
      %v93 = vperm.slane %v91, 0
      %v95 = vadd.f32 %v89, %v93
      %v96 = vadd.f32 %v90, %v93
      %97 = vst.msk [vmem:[#allocation2] sm:$0xff] %vm33, %v95
      %98 = vst.msk [vmem:[#allocation2 + $0x8] sm:$0xff] %vm33, %v96
      %99 = vst.msk [vmem:[#allocation3] sm:$0xff] %vm33, 0.0
      %100 = vst.msk [vmem:[#allocation3 + $0x8] sm:$0xff] %vm33, 0.0
    $region33: #{feed_forward_pallas.1} parent=1 // pred_fallthru
      _
    %v101 = vld [vmem:[#allocation2] sm:$0xff]
    %v102 = vld [vmem:[#allocation2 + $0x8] sm:$0xff]
    %v103 = vld [vmem:[%s3] sm:$0xff]
    %v104 = vld [vmem:[%s3 + $0x8] sm:$0xff]
    %v105 = vld [vmem:[%s3 + $0x10] sm:$0xff]
    %v106 = vld [vmem:[%s3 + $0x18] sm:$0xff]
    %v107 = vld [vmem:[%s4] sm:$0x1]
    %v109 = vperm.slane %v107, 0
    %vm111 = vcmask 261120
    %v113 = vsel %vm111, %v101, 0
    %v116 = vsel %vm111, %v102, 0
    %118 = vmatpush.msra.mxu0 0.0
    %119 = vmatpush.msra.mxu0 0.0
    %120 = vmatpush.msra.mxu0 0.0
    %121 = vmatpush.msra.mxu0 0.0
    %122 = vmatpush.msra.mxu0 0.0
    %123 = vmatpush.msra.mxu0 0.0
    %124 = vmatpush.msra.mxu0 0.0
    %125 = vmatpush.msra.mxu0 0.0
    %126 = vmatpush.msra.mxu0 0.0
    %127 = vmatpush.msra.mxu0 0.0
    %128 = vmatpush.msra.mxu0 0.0
    %129 = vmatpush.msra.mxu0 0.0
    %130 = vmatpush.msra.mxu0 %v106
    %131 = vmatpush.msra.mxu0 %v105
    %132 = vmatpush.msra.mxu0 %v104
    %133 = vmatpush.msra.mxu0 %v103
    %134 = vmatmul.f32.gmra.mxu0 %v113
    %v135 = vpop.f32.mrf.mxu0
    %v136 = vadd.f32 %v109, %v135
    %137 = vmatmul.f32.gmra.mxu0 %v116
    %v138 = vpop.f32.mrf.mxu0
    %v139 = vadd.f32 %v109, %v138
    %140 = vdwg.mxu0
    %v141 = vxor.u32 %v136, 2147483648
    %v142 = vxor.u32 %v139, 2147483648
    %v143 = vmul.f32 %v141, 1.442695
    %v144 = vpow.pop %v143
    %v145 = vmul.f32 %v142, 1.442695
    %v146 = vpow.pop %v145
    %v147 = vadd.f32 %v144, 1.0
    %v148 = vadd.f32 %v146, 1.0
    %v149 = vrcp.pop %v147
    %v150 = vmul.f32 %v147, %v149
    %v151 = vsub.f32 1.0, %v150
    %v152 = vmul.f32 %v149, %v151
    %v153 = vadd.f32 %v149, %v152
    %vm154 = vweird.f32 %v147
    %vm155 = vweird.f32 %v149
    %vm156 = vmor %vm154, %vm155
    %v157 = vsel %vm156, %v149, %v153
    %v158 = vand.u32 2147483647, %v147
    %vm159 = vcmp.eq.f32.partialorder %v158, 8.507059e+37
    %v160 = vand.u32 %v147, 2147483648
    %v161 = vor.u32 1.1754944e-38, %v160
    %v162 = vsel %vm159, %v161, %v157
    %v163 = vmul.f32 1.0, %v162
    %v164 = vrcp.pop %v148
    %v165 = vmul.f32 %v148, %v164
    %v166 = vsub.f32 1.0, %v165
    %v167 = vmul.f32 %v164, %v166
    %v168 = vadd.f32 %v164, %v167
    %vm169 = vweird.f32 %v148
    %vm170 = vweird.f32 %v164
    %vm171 = vmor %vm169, %vm170
    %v172 = vsel %vm171, %v164, %v168
    %v173 = vand.u32 2147483647, %v148
    %vm174 = vcmp.eq.f32.partialorder %v173, 8.507059e+37
    %v175 = vand.u32 %v148, 2147483648
    %v176 = vor.u32 1.1754944e-38, %v175
    %v177 = vsel %vm174, %v176, %v172
    %v178 = vmul.f32 1.0, %v177
    %v179 = vmul.f32 %v136, %v163
    %v180 = vmul.f32 %v139, %v178
    %v181 = vld [vmem:[#allocation3] sm:$0xff]
    %v182 = vld [vmem:[#allocation3 + $0x8] sm:$0xff]
    %v183 = vld [vmem:[%s5] sm:$0xff]
    %v184 = vld [vmem:[%s5 + $0x8] sm:$0xff]
    %v185 = vld [vmem:[%s5 + $0x10] sm:$0xff]
    %v186 = vld [vmem:[%s5 + $0x18] sm:$0xff]
    %v187 = vld [vmem:[%s5 + $0x20] sm:$0xff]
    %v188 = vld [vmem:[%s5 + $0x28] sm:$0xff]
    %v189 = vld [vmem:[%s5 + $0x30] sm:$0xff]
    %v190 = vld [vmem:[%s5 + $0x38] sm:$0xff]
    %vm191 = vcmask 523264
    %v193 = vsel %vm191, %v179, 0
    %v196 = vsel %vm191, %v180, 0
    %198 = vmatpush.msra.mxu0 0.0
    %199 = vmatpush.msra.mxu0 0.0
    %200 = vmatpush.msra.mxu0 0.0
    %201 = vmatpush.msra.mxu0 0.0
    %202 = vmatpush.msra.mxu0 0.0
    %203 = vmatpush.msra.mxu0 0.0
    %204 = vmatpush.msra.mxu0 0.0
    %205 = vmatpush.msra.mxu0 0.0
    %206 = vmatpush.msra.mxu0 %v190
    %207 = vmatpush.msra.mxu0 %v189
    %208 = vmatpush.msra.mxu0 %v188
    %209 = vmatpush.msra.mxu0 %v187
    %210 = vmatpush.msra.mxu0 %v186
    %211 = vmatpush.msra.mxu0 %v185
    %212 = vmatpush.msra.mxu0 %v184
    %213 = vmatpush.msra.mxu0 %v183
    %214 = vmatmul.f32.gmra.mxu0 %v193
    %v215 = vpop.f32.mrf.mxu0
    %v216 = vadd.f32 0.0, %v215
    %217 = vmatmul.f32.gmra.mxu0 %v196
    %v218 = vpop.f32.mrf.mxu0
    %v219 = vadd.f32 0.0, %v218
    %220 = vdwg.mxu0
    %v221 = vadd.f32 %v181, %v216
    %v222 = vadd.f32 %v182, %v219
    %223 = vst.msk [vmem:[#allocation3] sm:$0xff] %vm111, %v221
    %224 = vst.msk [vmem:[#allocation3 + $0x8] sm:$0xff] %vm111, %v222
    // Predicated region
    $region34: #{feed_forward_pallas.1} parent=1 // pred_check
      %p225 = pneg %p27
    $region35: #{feed_forward_pallas.1} parent=1 // pred_check_branch
      %227 = sbr.rel (%p225) target = $region37
    $region36: #{feed_forward_pallas.1} parent=1 // pred_region
      %v228 = vld [vmem:[#allocation3] sm:$0xff]
      %v229 = vld [vmem:[#allocation3 + $0x8] sm:$0xff]
      %v230 = vld [vmem:[%s6] sm:$0x1]
      %v232 = vperm.slane %v230, 0
      %v234 = vadd.f32 %v228, %v232
      %v235 = vadd.f32 %v229, %v232
      %236 = vst.msk [vmem:[#allocation4] sm:$0xff] %vm111, %v234
      %237 = vst.msk [vmem:[#allocation4 + $0x8] sm:$0xff] %vm111, %v235
    $region37: #{feed_forward_pallas.1} parent=1 // pred_fallthru
      _
    // Predicated region
    $region38: #{feed_forward_pallas.1} parent=1 // pred_check
      _
    $region39: #{feed_forward_pallas.1} parent=1 // pred_check_branch
      %239 = sbr.rel (0) target = $region41
    $region40: #{feed_forward_pallas.1} parent=1 // pred_region
      %241 = vsyncadd [#allocation5], 0
      %s242 = sshll.u32 [#allocation4], 4
      %s243 = int_to_ptr.vmem [resolvable:$true] %s242
      %s244 = sshll.u32 %s7, 4
      %s245 = int_to_ptr.hbm [resolvable:$true] %s244
      %250 = dma.vmem_to_hbm [thread:$0]  %s243, 256, %s245, [#allocation5], 128, 128, 8
    $region41: #{feed_forward_pallas.1} parent=1 // pred_fallthru
      _
    // Predicated region
    $region42: #{feed_forward_pallas.1} parent=1 // pred_check
      _
    $region43: #{feed_forward_pallas.1} parent=1 // pred_check_branch
      %252 = sbr.rel (0) target = $region45
    $region44: #{feed_forward_pallas.1} parent=1 // pred_region
      %254 = dma.done [#allocation5], 256
    $region45: #{feed_forward_pallas.1} parent=1 // pred_fallthru
      _
    %255 = vsyncpa [#allocation5], 1

</llo_original>
